<compile_context>
chip_gen: v6e
topology: v6e:2x2x1
jax: 0.10.0
libtpu: 0.0.40
codegen_flags: <defaults>
</compile_context>

<pallas_src>
import functools

import jax
import jax.numpy as jnp
from jax.experimental import pallas as pl
from jax.experimental.pallas import tpu as pltpu


def _round_up(n, m):
    return ((n + m - 1) // m) * m


def _gaussian_forecast_kernel(x_ref, p_ref, out_ref, *,
                              dim_in, hidden, horizon, r1):
    # ---- Layer 1: (TB, D) @ (D, hidden) + b1, ReLU  (MXU + VPU) ----
    w1 = p_ref[0:dim_in, 0:hidden]
    b1 = p_ref[dim_in:dim_in + 1, 0:hidden]
    h = jnp.dot(x_ref[...], w1, preferred_element_type=jnp.float32)
    h = jnp.maximum(h + b1, 0.0)

    # ---- Layer 2 (fused): one (TB, hidden) @ (hidden, 2H) matmul + one bias row ----
    w2 = p_ref[r1:r1 + hidden, 0:2 * horizon]
    b2 = p_ref[r1 + hidden:r1 + hidden + 1, 0:2 * horizon]
    out = jnp.dot(h, w2, preferred_element_type=jnp.float32) + b2

    # sigma lanes (col >= horizon): exp(clip(., -5, 5)); mu lanes pass through.
    # Lane-mask select only -- no in-kernel cross-lane split of the output.
    lane = jax.lax.broadcasted_iota(jnp.int32, out.shape, dimension=1)
    sig = jnp.exp(jnp.clip(out, -5.0, 5.0))                 # EUP exp, f32
    out_ref[...] = jnp.where(lane >= horizon, sig, out).astype(out_ref.dtype)


def gaussian_forecast(x, w1, b1, w2, b2, forecast_horizon, *, block_b=4096):
    """x: (B, D) f32; w1: (D, hidden); b1: (hidden,); w2: (hidden, 2H); b2: (2H,).

    Returns (mu, sigma), each (B, forecast_horizon) f32.
    """
    B, D = x.shape
    D_w, hidden = w1.shape
    H = forecast_horizon
    H2 = 2 * H
    assert D_w == D and w2.shape == (hidden, H2)

    # ---- wrapper-side layout plumbing (one contiguous, sublane-aligned slab) ----
    C = max(hidden, H2)
    r1 = _round_up(D + 1, 8)                   # layer-2 rows start sublane-aligned
    rows = _round_up(r1 + hidden + 1, 8)
    p = jnp.zeros((rows, C), jnp.float32)
    p = p.at[:D, :hidden].set(w1.astype(jnp.float32))
    p = p.at[D, :hidden].set(jnp.reshape(b1, (-1,)).astype(jnp.float32))
    p = p.at[r1:r1 + hidden, :H2].set(w2.astype(jnp.float32))
    p = p.at[r1 + hidden, :H2].set(jnp.reshape(b2, (-1,)).astype(jnp.float32))

    # ---- batch tile selection -------------------------------------------------
    # Per-row double-buffered VMEM cost with the (lane-padded) batch-major layout.
    lane = 128
    per_row_bytes = 2 * (_round_up(D, lane) + _round_up(H2, lane)) * 4
    vmem_budget = 40 << 20                      # safe under v7x's 64 MiB physical
    max_tb = max(8, ((vmem_budget // per_row_bytes) // 8) * 8)
    block_b = max(8, (min(block_b, max_tb) // 8) * 8)

    if B <= block_b:
        tb, b_pad = B, B                        # single block: full-dim shape is OK
    else:
        n_tiles = pl.cdiv(B, block_b)           # balance tiles to limit pad waste
        tb = _round_up(pl.cdiv(B, n_tiles), 8)
        b_pad = tb * pl.cdiv(B, tb)
    x_p = x if b_pad == B else jnp.pad(x, ((0, b_pad - B), (0, 0)))
    grid = (b_pad // tb,)

    # Raise the scoped VMEM limit (with headroom) only when the estimate exceeds
    # the smallest default (v5e: 16 MiB).  Cap below v7x physical VMEM.
    param_bytes = rows * _round_up(C, lane) * 4
    est_vmem = tb * per_row_bytes + 2 * param_bytes
    compiler_kwargs = {"dimension_semantics": ("parallel",)}
    if est_vmem > (12 << 20):
        compiler_kwargs["vmem_limit_bytes"] = min(
            int(est_vmem * 1.5) + (2 << 20), 48 << 20)

    kernel = functools.partial(_gaussian_forecast_kernel,
                               dim_in=D, hidden=hidden, horizon=H, r1=r1)

    cost = pl.CostEstimate(
        flops=2 * b_pad * hidden * (D + H2),
        transcendentals=b_pad * H2,
        bytes_accessed=4 * (b_pad * D + rows * C + b_pad * H2),
    )

    out = pl.pallas_call(
        kernel,
        out_shape=jax.ShapeDtypeStruct((b_pad, H2), jnp.float32),
        grid=grid,
        in_specs=[
            pl.BlockSpec((tb, D), lambda i: (i, 0)),     # x: tiled over batch
            pl.BlockSpec((rows, C), lambda i: (0, 0)),   # params: VMEM-resident
        ],
        out_specs=pl.BlockSpec((tb, H2), lambda i: (i, 0)),
        compiler_params=pltpu.CompilerParams(**compiler_kwargs),
        cost_estimate=cost,
    )(x_p, p)

    # mu / sigma split in the wrapper (free XLA slice of a narrow array).
    mu = out[:B, :H]
    sigma = out[:B, H:]
    return mu, sigma


if __name__ == "__main__":
    # Small shapes consistent with the module's forward.
    batch = 8
    input_len = 32
    hidden = 64
    forecast_horizon = 8

    key = jax.random.PRNGKey(0)
    kx, kw1, kb1, kw2, kb2 = jax.random.split(key, 5)

    # Deterministic synthetic parameters (no checkpoint loading).
    x = jax.random.normal(kx, (batch, input_len), dtype=jnp.float32)
    w1 = jax.random.normal(kw1, (input_len, hidden), dtype=jnp.float32) * 0.1
    b1 = jax.random.normal(kb1, (hidden,), dtype=jnp.float32) * 0.1
    w2 = jax.random.normal(kw2, (hidden, 2 * forecast_horizon), dtype=jnp.float32) * 0.1
    b2 = jax.random.normal(kb2, (2 * forecast_horizon,), dtype=jnp.float32) * 0.1

    def reference(xv):
        h = jnp.maximum(xv @ w1 + b1, 0.0)
        out = h @ w2 + b2
        mu_r = out[:, :forecast_horizon]
        sg_r = jnp.exp(jnp.clip(out[:, forecast_horizon:], -5.0, 5.0))
        return mu_r, sg_r

    # Small-batch path (single block).
    mu, sigma = gaussian_forecast(x, w1, b1, w2, b2, forecast_horizon)
    jax.block_until_ready((mu, sigma))
    mu_ref, sigma_ref = reference(x)
    assert mu.shape == (batch, forecast_horizon)
    assert sigma.shape == (batch, forecast_horizon)
    assert jnp.allclose(mu, mu_ref, atol=1e-5, rtol=1e-5)
    assert jnp.allclose(sigma, sigma_ref, atol=1e-5, rtol=1e-5)
    assert bool(jnp.all(sigma > 0.0))

    # Larger batch exercises the batch grid + balanced-tile padding path.
    big_b = 300
    xb = jax.random.normal(kx, (big_b, input_len), dtype=jnp.float32)
    mu_b, sigma_b = gaussian_forecast(xb, w1, b1, w2, b2, forecast_horizon,
                                      block_b=128)
    jax.block_until_ready((mu_b, sigma_b))
    mu_br, sigma_br = reference(xb)
    assert mu_b.shape == (big_b, forecast_horizon)
    assert sigma_b.shape == (big_b, forecast_horizon)
    assert jnp.allclose(mu_b, mu_br, atol=1e-5, rtol=1e-5)
    assert jnp.allclose(sigma_b, sigma_br, atol=1e-5, rtol=1e-5)
    assert bool(jnp.all(sigma_b > 0.0))

    print("KERNEL_OK")
</pallas_src>

<mosaic_0001>
module attributes {stable_mosaic.version = 11 : i64} {
  func.func @_gaussian_forecast_kernel(%arg0: i32, %arg1: memref<8x32xf32, #tpu.memory_space<vmem>>, %arg2: memref<112x64xf32, #tpu.memory_space<vmem>>, %arg3: memref<8x16xf32, #tpu.memory_space<vmem>>) attributes {dimension_semantics = [#tpu.dimension_semantics<parallel>], iteration_bounds = array<i64: 1>, scalar_prefetch = 0 : i64, scratch_operands = 0 : i64, tpu.core_type = #tpu.core_type<tc>, window_params = [{transform_indices = @transform_0, window_bounds = array<i64: 8, 32>}, {pipeline_mode = #tpu.pipeline_mode<synchronous>, transform_indices = @transform_1, window_bounds = array<i64: 112, 64>}, {transform_indices = @transform_2, window_bounds = array<i64: 8, 16>}]} {
    %c0 = arith.constant 0 : index
    %c0_0 = arith.constant 0 : index
    %0 = vector.load %arg2[%c0, %c0_0] : memref<112x64xf32, #tpu.memory_space<vmem>>, vector<32x64xf32>
    %c32 = arith.constant 32 : index
    %c0_1 = arith.constant 0 : index
    %1 = vector.load %arg2[%c32, %c0_1] : memref<112x64xf32, #tpu.memory_space<vmem>>, vector<1x64xf32>
    %c0_2 = arith.constant 0 : index
    %c0_3 = arith.constant 0 : index
    %2 = vector.load %arg1[%c0_2, %c0_3] : memref<8x32xf32, #tpu.memory_space<vmem>>, vector<8x32xf32>
    %cst = arith.constant dense<0.000000e+00> : vector<8x64xf32>
    %3 = tpu.matmul %2, %0, %cst {dimension_numbers = #tpu.dot_dimension_numbers<[1], [0], [0], [1], [0, 0, 1, 1], [], []>} : vector<8x32xf32>, vector<32x64xf32>, vector<8x64xf32> -> vector<8x64xf32>
    %4 = vector.broadcast %1 : vector<1x64xf32> to vector<8x64xf32>
    %5 = arith.addf %3, %4 : vector<8x64xf32>
    %cst_4 = arith.constant 0.000000e+00 : f32
    %6 = vector.broadcast %cst_4 : f32 to vector<8x64xf32>
    %7 = arith.maximumf %5, %6 : vector<8x64xf32>
    %c40 = arith.constant 40 : index
    %c0_5 = arith.constant 0 : index
    %8 = vector.load %arg2[%c40, %c0_5] : memref<112x64xf32, #tpu.memory_space<vmem>>, vector<64x16xf32>
    %c104 = arith.constant 104 : index
    %c0_6 = arith.constant 0 : index
    %9 = vector.load %arg2[%c104, %c0_6] : memref<112x64xf32, #tpu.memory_space<vmem>>, vector<1x16xf32>
    %cst_7 = arith.constant dense<0.000000e+00> : vector<8x16xf32>
    %10 = tpu.matmul %7, %8, %cst_7 {dimension_numbers = #tpu.dot_dimension_numbers<[1], [0], [0], [1], [0, 0, 1, 1], [], []>} : vector<8x64xf32>, vector<64x16xf32>, vector<8x16xf32> -> vector<8x16xf32>
    %11 = vector.broadcast %9 : vector<1x16xf32> to vector<8x16xf32>
    %12 = arith.addf %10, %11 : vector<8x16xf32>
    %13 = tpu.iota {dimensions = array<i32: 1>} : vector<8x16xi32>
    %cst_8 = arith.constant -5.000000e+00 : f32
    %cst_9 = arith.constant 5.000000e+00 : f32
    %14 = vector.broadcast %cst_8 : f32 to vector<8x16xf32>
    %15 = arith.maximumf %14, %12 : vector<8x16xf32>
    %16 = vector.broadcast %cst_9 : f32 to vector<8x16xf32>
    %17 = arith.minimumf %16, %15 : vector<8x16xf32>
    %18 = math.exp %17 : vector<8x16xf32>
    %c8_i32 = arith.constant 8 : i32
    %19 = vector.broadcast %c8_i32 : i32 to vector<8x16xi32>
    %20 = arith.cmpi sge, %13, %19 : vector<8x16xi32>
    %21 = arith.select %20, %18, %12 : vector<8x16xi1>, vector<8x16xf32>
    %c0_10 = arith.constant 0 : index
    %c0_11 = arith.constant 0 : index
    %22 = vector.load %arg3[%c0_10, %c0_11] : memref<8x16xf32, #tpu.memory_space<vmem>>, vector<8x16xf32>
    tpu.vector_store %arg3[%c0_10, %c0_11], %21 {strides = array<i32>} : memref<8x16xf32, #tpu.memory_space<vmem>>, vector<8x16xf32>,
    return
  }
  func.func @transform_0(%arg0: i32) -> (i32, i32) {
    %c0_i32 = arith.constant 0 : i32
    %c0_i32_0 = arith.constant 0 : i32
    return %arg0, %c0_i32 : i32, i32
  }
  func.func @transform_1(%arg0: i32) -> (i32, i32) {
    %c0_i32 = arith.constant 0 : i32
    %c0_i32_0 = arith.constant 0 : i32
    %c0_i32_1 = arith.constant 0 : i32
    return %c0_i32, %c0_i32_0 : i32, i32
  }
  func.func @transform_2(%arg0: i32) -> (i32, i32) {
    %c0_i32 = arith.constant 0 : i32
    %c0_i32_0 = arith.constant 0 : i32
    return %arg0, %c0_i32 : i32, i32
  }
}

</mosaic_0001>

<llo_original>
// kernel: tpu_custom_call.1
$region0: #{tpu_custom_call.1}
  #allocation0 [shape = 'u32[]', space=smem, size = 0x4, offset = 0x4, fixed_abs, tag = 'smem constant byte address 0x4 - core index']
  #allocation1 [shape = 'u32[144,128]{1,0:T(1,128)}', space=vmem, size = 0x12000, scoped, tag = 'internal scratch']
  %s0 = inlined_call_operand.vmem [shape: f32[8,32], index: 0, kind: input, shape index: {}]
  %s1 = inlined_call_operand.vmem [shape: f32[112,64], index: 1, kind: input, shape index: {}]
  %s2 = inlined_call_operand.hbm [shape: f32[8,16], index: 2, kind: output, shape index: {}]
  %s3 = sld [smem:[#allocation0]]
  $region18: #{tpu_custom_call.1} parent=0
    _
  %s5 = ssub.s32 1, %s3
  %s6 = scalar_select 0, %s5, %s3
  $region1: #{tpu_custom_call.1} parent=0
    #allocation2 [shape = 'u8[4096]{0}', space=vmem, size = 0x1000, scoped, tag = 'output window, operand 0, single buffered']
    #allocation3 [shape = 's32[1]{0}', space=sflag, size = 0x4, scoped, tag = 'scoped memory for tpu_custom_call.1']
    %7 = vsyncpa [#allocation3], 0
    // Predicated region
    $region2: #{tpu_custom_call.1} parent=1 // pred_check
      _
    $region3: #{tpu_custom_call.1} parent=1 // pred_check_branch
      %9 = sbr.rel (0) target = $region5
    $region4: #{tpu_custom_call.1} parent=1 // pred_region
      _
    $region5: #{tpu_custom_call.1} parent=1 // pred_fallthru
      _
    // Predicated region
    $region6: #{tpu_custom_call.1} parent=1 // pred_check
      _
    $region7: #{tpu_custom_call.1} parent=1 // pred_check_branch
      %11 = sbr.rel (0) target = $region9
    $region8: #{tpu_custom_call.1} parent=1 // pred_region
      _
    $region9: #{tpu_custom_call.1} parent=1 // pred_fallthru
      _
    %v12 = vld [vmem:[%s1] sm:$0xff]
    %v13 = vld [vmem:[%s1 + $0x8] sm:$0xff]
    %v14 = vld [vmem:[%s1 + $0x10] sm:$0xff]
    %v15 = vld [vmem:[%s1 + $0x18] sm:$0xff]
    %v16 = vld [vmem:[%s1 + $0x20] sm:$0x1]
    %v17 = vld [vmem:[%s0] sm:$0xff]
    %v18 = vlaneseq
    %v19 = vshrl.u32 %v18, 7
    %v20 = vsub.s32 0, %v19
    %v21 = vrot.slane %v16, %v20
    %vm22 = vcmask 261120
    %v24 = vsel %vm22, %v17, 0
    %26 = vmatprep.subr.mxu0 0.0
    %27 = vmatpush1.msra.mxu0 0.0
    %28 = vmatprep.subr.mxu0 0.0
    %29 = vmatpush1.msra.mxu0 0.0
    %30 = vmatprep.subr.mxu0 0.0
    %31 = vmatpush1.msra.mxu0 0.0
    %32 = vmatprep.subr.mxu0 0.0
    %33 = vmatpush1.msra.mxu0 0.0
    %34 = vmatprep.subr.mxu0 0.0
    %35 = vmatpush1.msra.mxu0 0.0
    %36 = vmatprep.subr.mxu0 0.0
    %37 = vmatpush1.msra.mxu0 0.0
    %38 = vmatprep.subr.mxu0 0.0
    %39 = vmatpush1.msra.mxu0 0.0
    %40 = vmatprep.subr.mxu0 0.0
    %41 = vmatpush1.msra.mxu0 0.0
    %42 = vmatprep.subr.mxu0 0.0
    %43 = vmatpush1.msra.mxu0 0.0
    %44 = vmatprep.subr.mxu0 0.0
    %45 = vmatpush1.msra.mxu0 0.0
    %46 = vmatprep.subr.mxu0 0.0
    %47 = vmatpush1.msra.mxu0 0.0
    %48 = vmatprep.subr.mxu0 0.0
    %49 = vmatpush1.msra.mxu0 0.0
    %50 = vmatprep.subr.mxu0 0.0
    %51 = vmatpush1.msra.mxu0 %v15
    %52 = vmatprep.subr.mxu0 0.0
    %53 = vmatpush1.msra.mxu0 %v14
    %54 = vmatprep.subr.mxu0 0.0
    %55 = vmatpush1.msra.mxu0 %v13
    %56 = vmatprep.subr.mxu0 0.0
    %57 = vmatpush1.msra.mxu0 %v12
    %58 = vmatprep.subr.mxu0 0.0
    %59 = vmatpush2.msra.mxu0 0.0
    %60 = vmatprep.subr.mxu0 0.0
    %61 = vmatpush2.msra.mxu0 0.0
    %62 = vmatprep.subr.mxu0 0.0
    %63 = vmatpush2.msra.mxu0 0.0
    %64 = vmatprep.subr.mxu0 0.0
    %65 = vmatpush2.msra.mxu0 0.0
    %66 = vmatprep.subr.mxu0 0.0
    %67 = vmatpush2.msra.mxu0 0.0
    %68 = vmatprep.subr.mxu0 0.0
    %69 = vmatpush2.msra.mxu0 0.0
    %70 = vmatprep.subr.mxu0 0.0
    %71 = vmatpush2.msra.mxu0 0.0
    %72 = vmatprep.subr.mxu0 0.0
    %73 = vmatpush2.msra.mxu0 0.0
    %74 = vmatprep.subr.mxu0 0.0
    %75 = vmatpush2.msra.mxu0 0.0
    %76 = vmatprep.subr.mxu0 0.0
    %77 = vmatpush2.msra.mxu0 0.0
    %78 = vmatprep.subr.mxu0 0.0
    %79 = vmatpush2.msra.mxu0 0.0
    %80 = vmatprep.subr.mxu0 0.0
    %81 = vmatpush2.msra.mxu0 0.0
    %82 = vmatprep.subr.mxu0 0.0
    %83 = vmatpush2.msra.mxu0 0.0
    %84 = vmatprep.subr.mxu0 0.0
    %85 = vmatpush2.msra.mxu0 0.0
    %86 = vmatprep.subr.mxu0 0.0
    %87 = vmatpush2.msra.mxu0 0.0
    %88 = vmatprep.subr.mxu0 0.0
    %89 = vmatpush2.msra.mxu0 0.0
    %90 = vmatprep.mubr.f32.mxu0 0.0
    %91 = vmatmul.mubr.f32.gmra.mxu0 %v24
    %v92 = vpop.f32.mrf.mxu0
    %v93 = vadd.f32 %v21, %v92
    %v94 = vpop.f32.mrf.mxu0
    %95 = vdwg.mxu0
    %v96 = vmax.f32 %v93, 0.0
    %v97 = vld [vmem:[%s1 + $0x28] sm:$0xff]
    %v98 = vld [vmem:[%s1 + $0x30] sm:$0xff]
    %v99 = vld [vmem:[%s1 + $0x38] sm:$0xff]
    %v100 = vld [vmem:[%s1 + $0x40] sm:$0xff]
    %v101 = vld [vmem:[%s1 + $0x48] sm:$0xff]
    %v102 = vld [vmem:[%s1 + $0x50] sm:$0xff]
    %v103 = vld [vmem:[%s1 + $0x58] sm:$0xff]
    %v104 = vld [vmem:[%s1 + $0x60] sm:$0xff]
    %v105 = vld [vmem:[%s1 + $0x68] sm:$0x1]
    %v106 = vlaneseq
    %v107 = vshrl.u32 %v106, 7
    %v108 = vsub.s32 0, %v107
    %v109 = vrot.slane %v105, %v108
    %vm110 = vcmask 523264
    %v112 = vsel %vm110, %v96, 0
    %114 = vmatprep.subr.mxu0 0.0
    %115 = vmatpush1.msra.mxu0 0.0
    %116 = vmatprep.subr.mxu0 0.0
    %117 = vmatpush1.msra.mxu0 0.0
    %118 = vmatprep.subr.mxu0 0.0
    %119 = vmatpush1.msra.mxu0 0.0
    %120 = vmatprep.subr.mxu0 0.0
    %121 = vmatpush1.msra.mxu0 0.0
    %122 = vmatprep.subr.mxu0 0.0
    %123 = vmatpush1.msra.mxu0 0.0
    %124 = vmatprep.subr.mxu0 0.0
    %125 = vmatpush1.msra.mxu0 0.0
    %126 = vmatprep.subr.mxu0 0.0
    %127 = vmatpush1.msra.mxu0 0.0
    %128 = vmatprep.subr.mxu0 0.0
    %129 = vmatpush1.msra.mxu0 0.0
    %130 = vmatprep.subr.mxu0 0.0
    %131 = vmatpush1.msra.mxu0 %v104
    %132 = vmatprep.subr.mxu0 0.0
    %133 = vmatpush1.msra.mxu0 %v103
    %134 = vmatprep.subr.mxu0 0.0
    %135 = vmatpush1.msra.mxu0 %v102
    %136 = vmatprep.subr.mxu0 0.0
    %137 = vmatpush1.msra.mxu0 %v101
    %138 = vmatprep.subr.mxu0 0.0
    %139 = vmatpush1.msra.mxu0 %v100
    %140 = vmatprep.subr.mxu0 0.0
    %141 = vmatpush1.msra.mxu0 %v99
    %142 = vmatprep.subr.mxu0 0.0
    %143 = vmatpush1.msra.mxu0 %v98
    %144 = vmatprep.subr.mxu0 0.0
    %145 = vmatpush1.msra.mxu0 %v97
    %146 = vmatprep.subr.mxu0 0.0
    %147 = vmatpush2.msra.mxu0 0.0
    %148 = vmatprep.subr.mxu0 0.0
    %149 = vmatpush2.msra.mxu0 0.0
    %150 = vmatprep.subr.mxu0 0.0
    %151 = vmatpush2.msra.mxu0 0.0
    %152 = vmatprep.subr.mxu0 0.0
    %153 = vmatpush2.msra.mxu0 0.0
    %154 = vmatprep.subr.mxu0 0.0
    %155 = vmatpush2.msra.mxu0 0.0
    %156 = vmatprep.subr.mxu0 0.0
    %157 = vmatpush2.msra.mxu0 0.0
    %158 = vmatprep.subr.mxu0 0.0
    %159 = vmatpush2.msra.mxu0 0.0
    %160 = vmatprep.subr.mxu0 0.0
    %161 = vmatpush2.msra.mxu0 0.0
    %162 = vmatprep.subr.mxu0 0.0
    %163 = vmatpush2.msra.mxu0 0.0
    %164 = vmatprep.subr.mxu0 0.0
    %165 = vmatpush2.msra.mxu0 0.0
    %166 = vmatprep.subr.mxu0 0.0
    %167 = vmatpush2.msra.mxu0 0.0
    %168 = vmatprep.subr.mxu0 0.0
    %169 = vmatpush2.msra.mxu0 0.0
    %170 = vmatprep.subr.mxu0 0.0
    %171 = vmatpush2.msra.mxu0 0.0
    %172 = vmatprep.subr.mxu0 0.0
    %173 = vmatpush2.msra.mxu0 0.0
    %174 = vmatprep.subr.mxu0 0.0
    %175 = vmatpush2.msra.mxu0 0.0
    %176 = vmatprep.subr.mxu0 0.0
    %177 = vmatpush2.msra.mxu0 0.0
    %178 = vmatprep.mubr.f32.mxu0 0.0
    %179 = vmatmul.mubr.f32.gmra.mxu0 %v112
    %v180 = vpop.f32.mrf.mxu0
    %v181 = vadd.f32 %v109, %v180
    %v182 = vpop.f32.mrf.mxu0
    %183 = vdwg.mxu0
    %v184 = vlaneseq
    %v185 = vand.u32 %v184, 127
    %v186 = vmax.f32 %v181, -5.0
    %v187 = vmin.f32 %v186, 5.0
    %v188 = vmul.f32 %v187, 1.442695
    %v189 = vpow.pop %v188
    %vm190 = vcmp.ge.s32.totalorder %v185, 8
    %v191 = vsel %vm190, %v189, %v181
    %vm192 = vcmask 130048
    %193 = vst.msk [vmem:[#allocation2] sm:$0xff] %vm192, %v191
    // Predicated region
    $region10: #{tpu_custom_call.1} parent=1 // pred_check
      _
    $region11: #{tpu_custom_call.1} parent=1 // pred_check_branch
      %195 = sbr.rel (0) target = $region13
    $region12: #{tpu_custom_call.1} parent=1 // pred_region
      %s197 = ssub.s32 128, 128
      %198 = vsyncadd [#allocation3], %s197
      %s200 = sshll.u32 [#allocation2], 4
      %s201 = int_to_ptr.vmem [resolvable:$true] %s200
      %203 = dma.vmem_to_hbm [thread:$0]  %s201, 128, %s2, [#allocation3]
    $region13: #{tpu_custom_call.1} parent=1 // pred_fallthru
      _
    // Predicated region
    $region14: #{tpu_custom_call.1} parent=1 // pred_check
      _
    $region15: #{tpu_custom_call.1} parent=1 // pred_check_branch
      %205 = sbr.rel (0) target = $region17
    $region16: #{tpu_custom_call.1} parent=1 // pred_region
      %206 = dma.done [#allocation3], 128
    $region17: #{tpu_custom_call.1} parent=1 // pred_fallthru
      _
    %207 = vsyncpa [#allocation3], 1

</llo_original>
